<compile_context>
chip_gen: v5e
topology: v5e:2x2
jax: 0.10.0
libtpu: 0.0.40
codegen_flags: <defaults>
</compile_context>

<pallas_src>
import functools

import jax
import jax.numpy as jnp
from jax.experimental import pallas as pl
from jax.experimental.pallas import tpu as pltpu


def _round_up(x: int, m: int) -> int:
    return (x + m - 1) // m * m


def _row_dim_semantics():
    """CORE_PARALLEL on v7x (2 TCs/chip); plain 'parallel' elsewhere."""
    core_parallel = getattr(pltpu, "CORE_PARALLEL", None)
    if core_parallel is not None:
        try:
            kind = jax.devices()[0].device_kind.lower()
        except Exception:  # pragma: no cover - defensive
            kind = ""
        if "v7" in kind:
            return (core_parallel,)
    return ("parallel",)


def dep_pairing_kernel(x_ref, w1_ref, b1_ref, wh_ref, bh_ref, out_ref,
                       *, o_dim: int, out_width: int):
    """One row-tile: shared pre-clf + fused two-head softmax + choose_direction."""
    # In-kernel cast (input stays f32 in HBM; cast is a free VPU op here).
    x_f32 = x_ref[...]                                        # [TN, D] f32
    x = x_f32.astype(jnp.bfloat16)

    # shared pre_clf_layer: Linear -> Tanh (Dropout(p=0.0) is identity).
    # MXU accumulates in f32; tanh runs on the f32 accumulator (v5e has no
    # bf16 EUP), then narrow once for the head matmul.
    z = jnp.dot(x, w1_ref[...], preferred_element_type=jnp.float32) + b1_ref[...]
    h = jnp.tanh(z).astype(x.dtype)                           # [TN, H] bf16

    # fused heads: one [H, 2*O] matmul instead of two [H, O] matmuls.
    logits = (jnp.dot(h, wh_ref[...], preferred_element_type=jnp.float32)
              + bh_ref[...])                                  # [TN, 2*O] f32

    def _softmax(l):
        m = jnp.max(l, axis=-1, keepdims=True)
        e = jnp.exp(l - m)
        # exact divide: 3-wide softmax, cost invisible under the HBM roof and
        # keeps argmax/tie behavior close to the torch reference.
        return e / jnp.sum(e, axis=-1, keepdims=True)

    p_l2r = _softmax(logits[:, :o_dim])                       # [TN, O]
    p_r2l = _softmax(logits[:, o_dim:2 * o_dim])              # [TN, O]

    # choose_direction fused in: torch.argmax takes the first index on ties,
    # so right2left wins only if strictly greater.
    max_l2r = jnp.max(p_l2r, axis=-1, keepdims=True)          # [TN, 1]
    max_r2l = jnp.max(p_r2l, axis=-1, keepdims=True)          # [TN, 1]
    go_r2l = max_r2l > max_l2r                                # [TN, 1] bool
    direction = go_r2l.astype(jnp.float32)                    # [TN, 1]
    pair_probs = jnp.where(go_r2l, p_r2l, p_l2r)              # [TN, O]

    # single narrow lane-dense packed store (out_width lanes, f32):
    #   [ pair_probs(O) | direction(1) | p_l2r(O) | p_r2l(O) | zeros ]
    pad = jnp.zeros((x_f32.shape[0], out_width - (3 * o_dim + 1)),
                    dtype=jnp.float32)
    out_ref[...] = jnp.concatenate(
        [pair_probs, direction, p_l2r, p_r2l, pad], axis=-1)


def dep_pairing_heads(pair_embs, params, *, max_tile_n=512,
                      compute_dtype=jnp.bfloat16, out_width=16):
    """left2right / right2left heads + choose_direction on TPU via Pallas."""
    N, D = pair_embs.shape
    H = params["w1"].shape[1]
    O = params["w_l2r"].shape[1]
    assert out_width >= 3 * O + 1

    # Fuse the two head weights (both heads share the same pre-classifier).
    w_heads = jnp.concatenate([params["w_l2r"], params["w_r2l"]], axis=1)  # [H, 2O]
    b_heads = jnp.concatenate([params["b_l2r"], params["b_r2l"]], axis=1)  # [1, 2O]

    # Weights are tiny and resident: pre-cast once.  The big pair_embs input
    # is NOT pre-cast — the kernel reads f32 rows and casts in-register.
    w1 = params["w1"].astype(compute_dtype)
    b1 = params["b1"].astype(jnp.float32)
    w_heads = w_heads.astype(compute_dtype)
    b_heads = b_heads.astype(jnp.float32)

    # Large row tiles (multiple of 16); pad N so every grid step gets a full tile.
    tile_n = min(max_tile_n, _round_up(N, 16))
    n_pad = _round_up(N, tile_n)
    x = pair_embs
    if n_pad != N:
        x = jnp.pad(x, ((0, n_pad - N), (0, 0)))

    grid = (n_pad // tile_n,)
    row = lambda i: (i, 0)
    full = lambda i: (0, 0)

    cost = pl.CostEstimate(
        flops=2 * n_pad * (D * H + H * 2 * O),
        transcendentals=n_pad * (H + 2 * O),
        bytes_accessed=n_pad * (D + out_width) * 4 + (D * H + H * 2 * O) * 2,
    )

    kernel = functools.partial(dep_pairing_kernel, o_dim=O, out_width=out_width)
    packed = pl.pallas_call(
        kernel,
        out_shape=jax.ShapeDtypeStruct((n_pad, out_width), jnp.float32),
        grid=grid,
        in_specs=[
            pl.BlockSpec((tile_n, D), row),      # pair_embs rows (f32)
            pl.BlockSpec((D, H), full),          # shared W1 (resident across steps)
            pl.BlockSpec((1, H), full),          # shared b1
            pl.BlockSpec((H, 2 * O), full),      # fused head weights
            pl.BlockSpec((1, 2 * O), full),      # fused head biases
        ],
        out_specs=pl.BlockSpec((tile_n, out_width), row),
        compiler_params=pltpu.CompilerParams(
            dimension_semantics=_row_dim_semantics()),
        cost_estimate=cost,
    )(x, w1, b1, w_heads, b_heads)

    packed = packed[:N]                          # padded rows never consumed
    pair_probs = packed[:, :O]
    directions = packed[:, O].astype(jnp.int32)
    p_l2r = packed[:, O + 1:2 * O + 1]
    p_r2l = packed[:, 2 * O + 1:3 * O + 1]
    return pair_probs, directions, p_l2r, p_r2l


def _reference(pair_embs, params):
    """Pure-JAX f32 reference mirroring the torch forward (dropout=0, eval)."""
    h = jnp.tanh(pair_embs @ params["w1"] + params["b1"])
    p_l2r = jax.nn.softmax(h @ params["w_l2r"] + params["b_l2r"], axis=-1)
    p_r2l = jax.nn.softmax(h @ params["w_r2l"] + params["b_r2l"], axis=-1)
    maxs = jnp.concatenate(
        [p_l2r.max(-1, keepdims=True), p_r2l.max(-1, keepdims=True)], axis=-1)
    directions = jnp.argmax(maxs, axis=-1).astype(jnp.int32)
    pair_probs = jnp.where(directions[:, None] == 1, p_r2l, p_l2r)
    return pair_probs, directions, p_l2r, p_r2l


if __name__ == "__main__":
    key = jax.random.PRNGKey(0)

    # small shapes consistent with the module:
    #   tree_lstm_h_size = 32 (bidirectional) -> tree_pair_embs = 3 * 32 = 96
    #   token_emb dim = 16                    -> unit_pair_embs = 2 * 16 = 32
    #   decoder_input_size = 96 + 32 = 128, decoder_h_size = 64,
    #   decoder_output_size = 3 (link labels), N = 64 candidate pairs.
    N, D_IN, D_H, D_OUT = 64, 128, 64, 3

    ks = jax.random.split(key, 8)
    pair_embs = jax.random.normal(ks[0], (N, D_IN), dtype=jnp.float32)
    params = {
        # shared pre_clf_layer (same object in both heads in the torch module)
        "w1": 0.1 * jax.random.normal(ks[1], (D_IN, D_H), dtype=jnp.float32),
        "b1": 0.1 * jax.random.normal(ks[2], (1, D_H), dtype=jnp.float32),
        "w_l2r": 0.1 * jax.random.normal(ks[3], (D_H, D_OUT), dtype=jnp.float32),
        "b_l2r": 0.1 * jax.random.normal(ks[4], (1, D_OUT), dtype=jnp.float32),
        "w_r2l": 0.1 * jax.random.normal(ks[5], (D_H, D_OUT), dtype=jnp.float32),
        "b_r2l": 0.1 * jax.random.normal(ks[6], (1, D_OUT), dtype=jnp.float32),
    }

    pair_probs, directions, l2r, r2l = dep_pairing_heads(pair_embs, params)
    jax.block_until_ready((pair_probs, directions, l2r, r2l))

    # sanity check against pure-JAX f32 reference.  The kernel uses bf16 MXU
    # inputs, so tolerances are loosened and the direction check tolerates
    # rows where the two heads' maxima nearly tie.
    ref_probs, ref_dirs, ref_l2r, ref_r2l = _reference(pair_embs, params)
    assert jnp.allclose(l2r, ref_l2r, rtol=5e-2, atol=2e-2)
    assert jnp.allclose(r2l, ref_r2l, rtol=5e-2, atol=2e-2)

    tie_margin = jnp.abs(ref_l2r.max(-1) - ref_r2l.max(-1))
    dir_ok = (directions == ref_dirs) | (tie_margin < 5e-2)
    assert bool(jnp.all(dir_ok))

    # the selection logic itself must match: the head picked by the kernel's
    # direction must equal the corresponding reference head row-by-row.
    sel_ref = jnp.where(directions[:, None] == 1, ref_r2l, ref_l2r)
    assert jnp.allclose(pair_probs, sel_ref, rtol=5e-2, atol=2e-2)

    print("KERNEL_OK")
</pallas_src>

<mosaic_0001>
module attributes {stable_mosaic.version = 11 : i64} {
  func.func @dep_pairing_kernel(%arg0: i32, %arg1: memref<64x128xf32, #tpu.memory_space<vmem>>, %arg2: memref<128x64xbf16, #tpu.memory_space<vmem>>, %arg3: memref<1x64xf32, #tpu.memory_space<vmem>>, %arg4: memref<64x6xbf16, #tpu.memory_space<vmem>>, %arg5: memref<1x6xf32, #tpu.memory_space<vmem>>, %arg6: memref<64x16xf32, #tpu.memory_space<vmem>>) attributes {dimension_semantics = [#tpu.dimension_semantics<parallel>], iteration_bounds = array<i64: 1>, scalar_prefetch = 0 : i64, scratch_operands = 0 : i64, tpu.core_type = #tpu.core_type<tc>, window_params = [{transform_indices = @transform_0, window_bounds = array<i64: 64, 128>}, {pipeline_mode = #tpu.pipeline_mode<synchronous>, transform_indices = @transform_1, window_bounds = array<i64: 128, 64>}, {pipeline_mode = #tpu.pipeline_mode<synchronous>, transform_indices = @transform_2, window_bounds = array<i64: 1, 64>}, {pipeline_mode = #tpu.pipeline_mode<synchronous>, transform_indices = @transform_3, window_bounds = array<i64: 64, 6>}, {pipeline_mode = #tpu.pipeline_mode<synchronous>, transform_indices = @transform_4, window_bounds = array<i64: 1, 6>}, {transform_indices = @transform_5, window_bounds = array<i64: 64, 16>}]} {
    %c0 = arith.constant 0 : index
    %c0_0 = arith.constant 0 : index
    %0 = vector.load %arg1[%c0, %c0_0] : memref<64x128xf32, #tpu.memory_space<vmem>>, vector<64x128xf32>
    %1 = arith.truncf %0 : vector<64x128xf32> to vector<64x128xbf16>
    %c0_1 = arith.constant 0 : index
    %c0_2 = arith.constant 0 : index
    %2 = vector.load %arg2[%c0_1, %c0_2] : memref<128x64xbf16, #tpu.memory_space<vmem>>, vector<128x64xbf16>
    %cst = arith.constant dense<0.000000e+00> : vector<64x64xf32>
    %3 = tpu.matmul %1, %2, %cst {dimension_numbers = #tpu.dot_dimension_numbers<[1], [0], [0], [1], [0, 0, 1, 1], [], []>} : vector<64x128xbf16>, vector<128x64xbf16>, vector<64x64xf32> -> vector<64x64xf32>
    %c0_3 = arith.constant 0 : index
    %c0_4 = arith.constant 0 : index
    %4 = vector.load %arg3[%c0_3, %c0_4] : memref<1x64xf32, #tpu.memory_space<vmem>>, vector<1x64xf32>
    %5 = vector.broadcast %4 : vector<1x64xf32> to vector<64x64xf32>
    %6 = arith.addf %3, %5 : vector<64x64xf32>
    %7 = math.tanh %6 : vector<64x64xf32>
    %8 = arith.truncf %7 : vector<64x64xf32> to vector<64x64xbf16>
    %c0_5 = arith.constant 0 : index
    %c0_6 = arith.constant 0 : index
    %9 = vector.load %arg4[%c0_5, %c0_6] : memref<64x6xbf16, #tpu.memory_space<vmem>>, vector<64x6xbf16>
    %cst_7 = arith.constant dense<0.000000e+00> : vector<64x6xf32>
    %10 = tpu.matmul %8, %9, %cst_7 {dimension_numbers = #tpu.dot_dimension_numbers<[1], [0], [0], [1], [0, 0, 1, 1], [], []>} : vector<64x64xbf16>, vector<64x6xbf16>, vector<64x6xf32> -> vector<64x6xf32>
    %c0_8 = arith.constant 0 : index
    %c0_9 = arith.constant 0 : index
    %11 = vector.load %arg5[%c0_8, %c0_9] : memref<1x6xf32, #tpu.memory_space<vmem>>, vector<1x6xf32>
    %12 = vector.broadcast %11 : vector<1x6xf32> to vector<64x6xf32>
    %13 = arith.addf %10, %12 : vector<64x6xf32>
    %14 = vector.extract_strided_slice %13 {offsets = [0, 0], sizes = [64, 3], strides = [1, 1]} : vector<64x6xf32> to vector<64x3xf32>
    %cst_10 = arith.constant dense<0xFF800000> : vector<64xf32>
    %15 = vector.multi_reduction <maximumf>, %14, %cst_10 [1] : vector<64x3xf32> to vector<64xf32>
    %16 = vector.shape_cast %15 : vector<64xf32> to vector<64x1xf32>
    %17 = vector.broadcast %16 : vector<64x1xf32> to vector<64x3xf32>
    %18 = arith.subf %14, %17 : vector<64x3xf32>
    %19 = math.exp %18 : vector<64x3xf32>
    %cst_11 = arith.constant dense<0.000000e+00> : vector<64xf32>
    %20 = vector.multi_reduction <add>, %19, %cst_11 [1] : vector<64x3xf32> to vector<64xf32>
    %21 = vector.shape_cast %20 : vector<64xf32> to vector<64x1xf32>
    %22 = vector.broadcast %21 : vector<64x1xf32> to vector<64x3xf32>
    %23 = arith.divf %19, %22 : vector<64x3xf32>
    %24 = vector.extract_strided_slice %13 {offsets = [0, 3], sizes = [64, 3], strides = [1, 1]} : vector<64x6xf32> to vector<64x3xf32>
    %cst_12 = arith.constant dense<0xFF800000> : vector<64xf32>
    %25 = vector.multi_reduction <maximumf>, %24, %cst_12 [1] : vector<64x3xf32> to vector<64xf32>
    %26 = vector.shape_cast %25 : vector<64xf32> to vector<64x1xf32>
    %27 = vector.broadcast %26 : vector<64x1xf32> to vector<64x3xf32>
    %28 = arith.subf %24, %27 : vector<64x3xf32>
    %29 = math.exp %28 : vector<64x3xf32>
    %cst_13 = arith.constant dense<0.000000e+00> : vector<64xf32>
    %30 = vector.multi_reduction <add>, %29, %cst_13 [1] : vector<64x3xf32> to vector<64xf32>
    %31 = vector.shape_cast %30 : vector<64xf32> to vector<64x1xf32>
    %32 = vector.broadcast %31 : vector<64x1xf32> to vector<64x3xf32>
    %33 = arith.divf %29, %32 : vector<64x3xf32>
    %cst_14 = arith.constant dense<0xFF800000> : vector<64xf32>
    %34 = vector.multi_reduction <maximumf>, %23, %cst_14 [1] : vector<64x3xf32> to vector<64xf32>
    %35 = vector.shape_cast %34 : vector<64xf32> to vector<64x1xf32>
    %cst_15 = arith.constant dense<0xFF800000> : vector<64xf32>
    %36 = vector.multi_reduction <maximumf>, %33, %cst_15 [1] : vector<64x3xf32> to vector<64xf32>
    %37 = vector.shape_cast %36 : vector<64xf32> to vector<64x1xf32>
    %38 = arith.cmpf ogt, %37, %35 : vector<64x1xf32>
    %39 = arith.extui %38 : vector<64x1xi1> to vector<64x1xi32>
    %40 = arith.sitofp %39 : vector<64x1xi32> to vector<64x1xf32>
    %41 = vector.shape_cast %38 : vector<64x1xi1> to vector<64x1xi1>
    %42 = vector.broadcast %41 : vector<64x1xi1> to vector<64x3xi1>
    %43 = arith.select %42, %33, %23 : vector<64x3xi1>, vector<64x3xf32>
    %cst_16 = arith.constant 0.000000e+00 : f32
    %44 = vector.broadcast %cst_16 : f32 to vector<64x6xf32>
    %45 = tpu.concatenate %43, %40, %23, %33, %44 in 1 : vector<64x3xf32>, vector<64x1xf32>, vector<64x3xf32>, vector<64x3xf32>, vector<64x6xf32> -> vector<64x16xf32>
    %c0_17 = arith.constant 0 : index
    %c0_18 = arith.constant 0 : index
    %46 = vector.load %arg6[%c0_17, %c0_18] : memref<64x16xf32, #tpu.memory_space<vmem>>, vector<64x16xf32>
    tpu.vector_store %arg6[%c0_17, %c0_18], %45 {strides = array<i32>} : memref<64x16xf32, #tpu.memory_space<vmem>>, vector<64x16xf32>,
    return
  }
  func.func @transform_0(%arg0: i32) -> (i32, i32) {
    %c0_i32 = arith.constant 0 : i32
    %c0_i32_0 = arith.constant 0 : i32
    return %arg0, %c0_i32 : i32, i32
  }
  func.func @transform_1(%arg0: i32) -> (i32, i32) {
    %c0_i32 = arith.constant 0 : i32
    %c0_i32_0 = arith.constant 0 : i32
    %c0_i32_1 = arith.constant 0 : i32
    return %c0_i32, %c0_i32_0 : i32, i32
  }
  func.func @transform_2(%arg0: i32) -> (i32, i32) {
    %c0_i32 = arith.constant 0 : i32
    %c0_i32_0 = arith.constant 0 : i32
    %c0_i32_1 = arith.constant 0 : i32
    return %c0_i32, %c0_i32_0 : i32, i32
  }
  func.func @transform_3(%arg0: i32) -> (i32, i32) {
    %c0_i32 = arith.constant 0 : i32
    %c0_i32_0 = arith.constant 0 : i32
    %c0_i32_1 = arith.constant 0 : i32
    return %c0_i32, %c0_i32_0 : i32, i32
  }
  func.func @transform_4(%arg0: i32) -> (i32, i32) {
    %c0_i32 = arith.constant 0 : i32
    %c0_i32_0 = arith.constant 0 : i32
    %c0_i32_1 = arith.constant 0 : i32
    return %c0_i32, %c0_i32_0 : i32, i32
  }
  func.func @transform_5(%arg0: i32) -> (i32, i32) {
    %c0_i32 = arith.constant 0 : i32
    %c0_i32_0 = arith.constant 0 : i32
    return %arg0, %c0_i32 : i32, i32
  }
}

</mosaic_0001>

<llo_original>
// kernel: tpu_custom_call.1
$region0: #{tpu_custom_call.1}
  #allocation0 [shape = 'u32[]', space=smem, size = 0x4, offset = 0x4, fixed_abs, tag = 'smem constant byte address 0x4 - core index']
  #allocation1 [shape = 'u32[72,128]{1,0:T(1,128)}', space=vmem, size = 0x9000, scoped, tag = 'internal scratch']
  %s0 = inlined_call_operand.vmem [shape: f32[64,128], index: 0, kind: input, shape index: {}]
  %s1 = inlined_call_operand.vmem [shape: bf16[128,64], index: 1, kind: input, shape index: {}]
  %s2 = inlined_call_operand.vmem [shape: f32[1,64], index: 2, kind: input, shape index: {}]
  %s3 = inlined_call_operand.vmem [shape: bf16[64,6], index: 3, kind: input, shape index: {}]
  %s4 = inlined_call_operand.vmem [shape: f32[1,6], index: 4, kind: input, shape index: {}]
  %s5 = inlined_call_operand.vmem [shape: f32[64,16], index: 5, kind: output, shape index: {}]
  %s6 = sld [smem:[#allocation0]]
  $region30: #{tpu_custom_call.1} parent=0
    _
  %s8 = ssub.s32 1, %s6
  %s9 = scalar_select 0, %s8, %s6
  // Predicated region
  $region2: #{tpu_custom_call.1} parent=0 // pred_check
    _
  $region3: #{tpu_custom_call.1} parent=0 // pred_check_branch
    %11 = sbr.rel (0) target = $region5
  $region4: #{tpu_custom_call.1} parent=0 // pred_region
    _
  $region5: #{tpu_custom_call.1} parent=0 // pred_fallthru
    _
  // Predicated region
  $region6: #{tpu_custom_call.1} parent=0 // pred_check
    _
  $region7: #{tpu_custom_call.1} parent=0 // pred_check_branch
    %13 = sbr.rel (0) target = $region9
  $region8: #{tpu_custom_call.1} parent=0 // pred_region
    _
  $region9: #{tpu_custom_call.1} parent=0 // pred_fallthru
    _
  // Predicated region
  $region10: #{tpu_custom_call.1} parent=0 // pred_check
    _
  $region11: #{tpu_custom_call.1} parent=0 // pred_check_branch
    %15 = sbr.rel (0) target = $region13
  $region12: #{tpu_custom_call.1} parent=0 // pred_region
    _
  $region13: #{tpu_custom_call.1} parent=0 // pred_fallthru
    _
  // Predicated region
  $region14: #{tpu_custom_call.1} parent=0 // pred_check
    _
  $region15: #{tpu_custom_call.1} parent=0 // pred_check_branch
    %17 = sbr.rel (0) target = $region17
  $region16: #{tpu_custom_call.1} parent=0 // pred_region
    _
  $region17: #{tpu_custom_call.1} parent=0 // pred_fallthru
    _
  // Predicated region
  $region18: #{tpu_custom_call.1} parent=0 // pred_check
    _
  $region19: #{tpu_custom_call.1} parent=0 // pred_check_branch
    %19 = sbr.rel (0) target = $region21
  $region20: #{tpu_custom_call.1} parent=0 // pred_region
    _
  $region21: #{tpu_custom_call.1} parent=0 // pred_fallthru
    _
  %v21 = vld [vmem:[%s0] sm:$0xff]
  %v22 = vld [vmem:[%s0 + $0x8] sm:$0xff]
  %v23 = vld [vmem:[%s0 + $0x10] sm:$0xff]
  %v24 = vld [vmem:[%s0 + $0x18] sm:$0xff]
  %v25 = vld [vmem:[%s0 + $0x20] sm:$0xff]
  %v26 = vld [vmem:[%s0 + $0x28] sm:$0xff]
  %v27 = vld [vmem:[%s0 + $0x30] sm:$0xff]
  %v28 = vld [vmem:[%s0 + $0x38] sm:$0xff]
  %v29 = vpack.c.bf16 %v22, %v21
  %v30 = vpack.c.bf16 %v24, %v23
  %v31 = vpack.c.bf16 %v26, %v25
  %v32 = vpack.c.bf16 %v28, %v27
  %v33 = vld [vmem:[%s1] sm:$0xf]
  %v34 = vld [vmem:[%s1 + $0x4] sm:$0xf]
  %v35 = vld [vmem:[%s1 + $0x8] sm:$0xf]
  %v36 = vld [vmem:[%s1 + $0xc] sm:$0xf]
  %v37 = vld [vmem:[%s1 + $0x10] sm:$0xf]
  %v38 = vld [vmem:[%s1 + $0x14] sm:$0xf]
  %v39 = vld [vmem:[%s1 + $0x18] sm:$0xf]
  %v40 = vld [vmem:[%s1 + $0x1c] sm:$0xf]
  %v41 = vld [vmem:[%s1 + $0x20] sm:$0xf]
  %v42 = vld [vmem:[%s1 + $0x24] sm:$0xf]
  %v43 = vld [vmem:[%s1 + $0x28] sm:$0xf]
  %v44 = vld [vmem:[%s1 + $0x2c] sm:$0xf]
  %v45 = vld [vmem:[%s1 + $0x30] sm:$0xf]
  %v46 = vld [vmem:[%s1 + $0x34] sm:$0xf]
  %v47 = vld [vmem:[%s1 + $0x38] sm:$0xf]
  %v48 = vld [vmem:[%s1 + $0x3c] sm:$0xf]
  %v49 = vld [vmem:[%s2] sm:$0x1]
  %v51 = vperm.slane %v49, 0
  %v69 = vunpack.c.l.b16 %v33
  %v70 = vunpack.c.l.b16 %v34
  %v71 = vunpack.c.l.b16 %v35
  %v72 = vunpack.c.l.b16 %v36
  %v73 = vunpack.c.l.b16 %v37
  %v74 = vunpack.c.l.b16 %v38
  %v75 = vunpack.c.l.b16 %v39
  %v76 = vunpack.c.l.b16 %v40
  %v77 = vunpack.c.l.b16 %v41
  %v78 = vunpack.c.l.b16 %v42
  %v79 = vunpack.c.l.b16 %v43
  %v80 = vunpack.c.l.b16 %v44
  %v81 = vunpack.c.l.b16 %v45
  %v82 = vunpack.c.l.b16 %v46
  %v83 = vunpack.c.l.b16 %v47
  %v84 = vunpack.c.l.b16 %v48
  %v85 = vpack.c.b16 %v70, %v69
  %v86 = vpack.c.b16 %v72, %v71
  %v87 = vpack.c.b16 %v74, %v73
  %v88 = vpack.c.b16 %v76, %v75
  %v89 = vpack.c.b16 %v78, %v77
  %v90 = vpack.c.b16 %v80, %v79
  %v91 = vpack.c.b16 %v82, %v81
  %v92 = vpack.c.b16 %v84, %v83
  %101 = vmatpush.bf16.msra.mxu0 %v92
  %102 = vmatpush.bf16.msra.mxu0 %v91
  %103 = vmatpush.bf16.msra.mxu0 %v90
  %104 = vmatpush.bf16.msra.mxu0 %v89
  %105 = vmatpush.bf16.msra.mxu0 %v88
  %106 = vmatpush.bf16.msra.mxu0 %v87
  %107 = vmatpush.bf16.msra.mxu0 %v86
  %108 = vmatpush.bf16.msra.mxu0 %v85
  %109 = vmatmul.bf16.gmra.mxu0 %v29
  %v110 = vpop.f32.mrf.mxu0
  %v111 = vadd.f32 %v51, %v110
  %v112 = vpop.f32.mrf.mxu0
  %v113 = vadd.f32 %v51, %v112
  %114 = vmatmul.bf16.gmra.mxu0 %v30
  %v115 = vpop.f32.mrf.mxu0
  %v116 = vadd.f32 %v51, %v115
  %v117 = vpop.f32.mrf.mxu0
  %v118 = vadd.f32 %v51, %v117
  %119 = vmatmul.bf16.gmra.mxu0 %v31
  %v120 = vpop.f32.mrf.mxu0
  %v121 = vadd.f32 %v51, %v120
  %v122 = vpop.f32.mrf.mxu0
  %v123 = vadd.f32 %v51, %v122
  %124 = vmatmul.bf16.gmra.mxu0 %v32
  %v125 = vpop.f32.mrf.mxu0
  %v126 = vadd.f32 %v51, %v125
  %v127 = vpop.f32.mrf.mxu0
  %v128 = vadd.f32 %v51, %v127
  %129 = vdwg.mxu0
  %v130 = vtanh.pop %v111
  %v131 = vtanh.pop %v113
  %v132 = vtanh.pop %v116
  %v133 = vtanh.pop %v118
  %v134 = vtanh.pop %v121
  %v135 = vtanh.pop %v123
  %v136 = vtanh.pop %v126
  %v137 = vtanh.pop %v128
  %v138 = vpack.c.bf16 %v131, %v130
  %v139 = vpack.c.bf16 %v133, %v132
  %v140 = vpack.c.bf16 %v135, %v134
  %v141 = vpack.c.bf16 %v137, %v136
  %v142 = vld [vmem:[%s3] sm:$0xf]
  %v143 = vld [vmem:[%s3 + $0x4] sm:$0xf]
  %v144 = vld [vmem:[%s3 + $0x8] sm:$0xf]
  %v145 = vld [vmem:[%s3 + $0xc] sm:$0xf]
  %v146 = vld [vmem:[%s3 + $0x10] sm:$0xf]
  %v147 = vld [vmem:[%s3 + $0x14] sm:$0xf]
  %v148 = vld [vmem:[%s3 + $0x18] sm:$0xf]
  %v149 = vld [vmem:[%s3 + $0x1c] sm:$0xf]
  %v150 = vld [vmem:[%s4] sm:$0x1]
  %v152 = vperm.slane %v150, 0
  %v162 = vunpack.c.l.b16 %v142
  %v163 = vunpack.c.l.b16 %v143
  %v164 = vunpack.c.l.b16 %v144
  %v165 = vunpack.c.l.b16 %v145
  %v166 = vunpack.c.l.b16 %v146
  %v167 = vunpack.c.l.b16 %v147
  %v168 = vunpack.c.l.b16 %v148
  %v169 = vunpack.c.l.b16 %v149
  %v170 = vpack.c.b16 %v163, %v162
  %v171 = vpack.c.b16 %v165, %v164
  %v172 = vpack.c.b16 %v167, %v166
  %v173 = vpack.c.b16 %v169, %v168
  %vm178 = vcmask 523264
  %v180 = vsel %vm178, %v138, 0
  %v183 = vsel %vm178, %v139, 0
  %v186 = vsel %vm178, %v140, 0
  %v189 = vsel %vm178, %v141, 0
  %191 = vmatpush.bf16.msra.mxu0 0
  %192 = vmatpush.bf16.msra.mxu0 0
  %193 = vmatpush.bf16.msra.mxu0 0
  %194 = vmatpush.bf16.msra.mxu0 0
  %195 = vmatpush.bf16.msra.mxu0 %v173
  %196 = vmatpush.bf16.msra.mxu0 %v172
  %197 = vmatpush.bf16.msra.mxu0 %v171
  %198 = vmatpush.bf16.msra.mxu0 %v170
  %199 = vmatmul.bf16.gmra.mxu0 %v180
  %v200 = vpop.f32.mrf.mxu0
  %v201 = vadd.f32 %v152, %v200
  %v202 = vpop.f32.mrf.mxu0
  %v203 = vadd.f32 %v152, %v202
  %204 = vmatmul.bf16.gmra.mxu0 %v183
  %v205 = vpop.f32.mrf.mxu0
  %v206 = vadd.f32 %v152, %v205
  %v207 = vpop.f32.mrf.mxu0
  %v208 = vadd.f32 %v152, %v207
  %209 = vmatmul.bf16.gmra.mxu0 %v186
  %v210 = vpop.f32.mrf.mxu0
  %v211 = vadd.f32 %v152, %v210
  %v212 = vpop.f32.mrf.mxu0
  %v213 = vadd.f32 %v152, %v212
  %214 = vmatmul.bf16.gmra.mxu0 %v189
  %v215 = vpop.f32.mrf.mxu0
  %v216 = vadd.f32 %v152, %v215
  %v217 = vpop.f32.mrf.mxu0
  %v218 = vadd.f32 %v152, %v217
  %219 = vdwg.mxu0
  %vm220 = vcmask 23552
  %v221 = vsel %vm220, %v201, -inf
  %222 = vmax.xlane.f32.xlu0 %v221
  %v223 = vpop.xlane.xlu0 %222
  %v224 = vsel %vm220, %v203, -inf
  %225 = vmax.xlane.f32.xlu0 %v224
  %v226 = vpop.xlane.xlu0 %225
  %v227 = vsel %vm220, %v206, -inf
  %228 = vmax.xlane.f32.xlu0 %v227
  %v229 = vpop.xlane.xlu0 %228
  %v230 = vsel %vm220, %v208, -inf
  %231 = vmax.xlane.f32.xlu0 %v230
  %v232 = vpop.xlane.xlu0 %231
  %v233 = vsel %vm220, %v211, -inf
  %234 = vmax.xlane.f32.xlu0 %v233
  %v235 = vpop.xlane.xlu0 %234
  %v236 = vsel %vm220, %v213, -inf
  %237 = vmax.xlane.f32.xlu0 %v236
  %v238 = vpop.xlane.xlu0 %237
  %v239 = vsel %vm220, %v216, -inf
  %240 = vmax.xlane.f32.xlu0 %v239
  %v241 = vpop.xlane.xlu0 %240
  %v242 = vsel %vm220, %v218, -inf
  %243 = vmax.xlane.f32.xlu0 %v242
  %v244 = vpop.xlane.xlu0 %243
  %v245 = vsub.f32 %v201, %v223
  %v246 = vsub.f32 %v203, %v226
  %v247 = vsub.f32 %v206, %v229
  %v248 = vsub.f32 %v208, %v232
  %v249 = vsub.f32 %v211, %v235
  %v250 = vsub.f32 %v213, %v238
  %v251 = vsub.f32 %v216, %v241
  %v252 = vsub.f32 %v218, %v244
  %v253 = vmul.f32 %v245, 1.442695
  %v254 = vpow.pop %v253
  %v255 = vmul.f32 %v246, 1.442695
  %v256 = vpow.pop %v255
  %v257 = vmul.f32 %v247, 1.442695
  %v258 = vpow.pop %v257
  %v259 = vmul.f32 %v248, 1.442695
  %v260 = vpow.pop %v259
  %v261 = vmul.f32 %v249, 1.442695
  %v262 = vpow.pop %v261
  %v263 = vmul.f32 %v250, 1.442695
  %v264 = vpow.pop %v263
  %v265 = vmul.f32 %v251, 1.442695
  %v266 = vpow.pop %v265
  %v267 = vmul.f32 %v252, 1.442695
  %v268 = vpow.pop %v267
  %v269 = vsel %vm220, %v254, 0.0
  %270 = vadd.xlane.f32.xlu0 %v269
  %v271 = vpop.xlane.xlu0 %270
  %v272 = vsel %vm220, %v256, 0.0
  %273 = vadd.xlane.f32.xlu0 %v272
  %v274 = vpop.xlane.xlu0 %273
  %v275 = vsel %vm220, %v258, 0.0
  %276 = vadd.xlane.f32.xlu0 %v275
  %v277 = vpop.xlane.xlu0 %276
  %v278 = vsel %vm220, %v260, 0.0
  %279 = vadd.xlane.f32.xlu0 %v278
  %v280 = vpop.xlane.xlu0 %279
  %v281 = vsel %vm220, %v262, 0.0
  %282 = vadd.xlane.f32.xlu0 %v281
  %v283 = vpop.xlane.xlu0 %282
  %v284 = vsel %vm220, %v264, 0.0
  %285 = vadd.xlane.f32.xlu0 %v284
  %v286 = vpop.xlane.xlu0 %285
  %v287 = vsel %vm220, %v266, 0.0
  %288 = vadd.xlane.f32.xlu0 %v287
  %v289 = vpop.xlane.xlu0 %288
  %v290 = vsel %vm220, %v268, 0.0
  %291 = vadd.xlane.f32.xlu0 %v290
  %v292 = vpop.xlane.xlu0 %291
  %v293 = vrcp.pop %v271
  %v294 = vmul.f32 %v271, %v293
  %v295 = vsub.f32 1.0, %v294
  %v296 = vmul.f32 %v293, %v295
  %v297 = vadd.f32 %v293, %v296
  %vm298 = vweird.f32 %v271
  %vm299 = vweird.f32 %v293
  %vm300 = vmor %vm298, %vm299
  %v301 = vsel %vm300, %v293, %v297
  %v302 = vand.u32 2147483647, %v271
  %vm303 = vcmp.eq.f32.partialorder %v302, 8.507059e+37
  %v304 = vand.u32 %v271, 2147483648
  %v305 = vor.u32 1.1754944e-38, %v304
  %v306 = vsel %vm303, %v305, %v301
  %v307 = vmul.f32 %v254, %v306
  %v308 = vrcp.pop %v274
  %v309 = vmul.f32 %v274, %v308
  %v310 = vsub.f32 1.0, %v309
  %v311 = vmul.f32 %v308, %v310
  %v312 = vadd.f32 %v308, %v311
  %vm313 = vweird.f32 %v274
  %vm314 = vweird.f32 %v308
  %vm315 = vmor %vm313, %vm314
  %v316 = vsel %vm315, %v308, %v312
  %v317 = vand.u32 2147483647, %v274
  %vm318 = vcmp.eq.f32.partialorder %v317, 8.507059e+37
  %v319 = vand.u32 %v274, 2147483648
  %v320 = vor.u32 1.1754944e-38, %v319
  %v321 = vsel %vm318, %v320, %v316
  %v322 = vmul.f32 %v256, %v321
  %v323 = vrcp.pop %v277
  %v324 = vmul.f32 %v277, %v323
  %v325 = vsub.f32 1.0, %v324
  %v326 = vmul.f32 %v323, %v325
  %v327 = vadd.f32 %v323, %v326
  %vm328 = vweird.f32 %v277
  %vm329 = vweird.f32 %v323
  %vm330 = vmor %vm328, %vm329
  %v331 = vsel %vm330, %v323, %v327
  %v332 = vand.u32 2147483647, %v277
  %vm333 = vcmp.eq.f32.partialorder %v332, 8.507059e+37
  %v334 = vand.u32 %v277, 2147483648
  %v335 = vor.u32 1.1754944e-38, %v334
  %v336 = vsel %vm333, %v335, %v331
  %v337 = vmul.f32 %v258, %v336
  %v338 = vrcp.pop %v280
  %v339 = vmul.f32 %v280, %v338
  %v340 = vsub.f32 1.0, %v339
  %v341 = vmul.f32 %v338, %v340
  %v342 = vadd.f32 %v338, %v341
  %vm343 = vweird.f32 %v280
  %vm344 = vweird.f32 %v338
  %vm345 = vmor %vm343, %vm344
  %v346 = vsel %vm345, %v338, %v342
  %v347 = vand.u32 2147483647, %v280
  %vm348 = vcmp.eq.f32.partialorder %v347, 8.507059e+37
  %v349 = vand.u32 %v280, 2147483648
  %v350 = vor.u32 1.1754944e-38, %v349
  %v351 = vsel %vm348, %v350, %v346
  %v352 = vmul.f32 %v260, %v351
  %v353 = vrcp.pop %v283
  %v354 = vmul.f32 %v283, %v353
  %v355 = vsub.f32 1.0, %v354
  %v356 = vmul.f32 %v353, %v355
  %v357 = vadd.f32 %v353, %v356
  %vm358 = vweird.f32 %v283
  %vm359 = vweird.f32 %v353
  %vm360 = vmor %vm358, %vm359
  %v361 = vsel %vm360, %v353, %v357
  %v362 = vand.u32 2147483647, %v283
  %vm363 = vcmp.eq.f32.partialorder %v362, 8.507059e+37
  %v364 = vand.u32 %v283, 2147483648
  %v365 = vor.u32 1.1754944e-38, %v364
  %v366 = vsel %vm363, %v365, %v361
  %v367 = vmul.f32 %v262, %v366
  %v368 = vrcp.pop %v286
  %v369 = vmul.f32 %v286, %v368
  %v370 = vsub.f32 1.0, %v369
  %v371 = vmul.f32 %v368, %v370
  %v372 = vadd.f32 %v368, %v371
  %vm373 = vweird.f32 %v286
  %vm374 = vweird.f32 %v368
  %vm375 = vmor %vm373, %vm374
  %v376 = vsel %vm375, %v368, %v372
  %v377 = vand.u32 2147483647, %v286
  %vm378 = vcmp.eq.f32.partialorder %v377, 8.507059e+37
  %v379 = vand.u32 %v286, 2147483648
  %v380 = vor.u32 1.1754944e-38, %v379
  %v381 = vsel %vm378, %v380, %v376
  %v382 = vmul.f32 %v264, %v381
  %v383 = vrcp.pop %v289
  %v384 = vmul.f32 %v289, %v383
  %v385 = vsub.f32 1.0, %v384
  %v386 = vmul.f32 %v383, %v385
  %v387 = vadd.f32 %v383, %v386
  %vm388 = vweird.f32 %v289
  %vm389 = vweird.f32 %v383
  %vm390 = vmor %vm388, %vm389
  %v391 = vsel %vm390, %v383, %v387
  %v392 = vand.u32 2147483647, %v289
  %vm393 = vcmp.eq.f32.partialorder %v392, 8.507059e+37
  %v394 = vand.u32 %v289, 2147483648
  %v395 = vor.u32 1.1754944e-38, %v394
  %v396 = vsel %vm393, %v395, %v391
  %v397 = vmul.f32 %v266, %v396
  %v398 = vrcp.pop %v292
  %v399 = vmul.f32 %v292, %v398
  %v400 = vsub.f32 1.0, %v399
  %v401 = vmul.f32 %v398, %v400
  %v402 = vadd.f32 %v398, %v401
  %vm403 = vweird.f32 %v292
  %vm404 = vweird.f32 %v398
  %vm405 = vmor %vm403, %vm404
  %v406 = vsel %vm405, %v398, %v402
  %v407 = vand.u32 2147483647, %v292
  %vm408 = vcmp.eq.f32.partialorder %v407, 8.507059e+37
  %v409 = vand.u32 %v292, 2147483648
  %v410 = vor.u32 1.1754944e-38, %v409
  %v411 = vsel %vm408, %v410, %v406
  %v412 = vmul.f32 %v268, %v411
  %vm413 = vcmask 48152
  %v414 = vsel %vm413, %v201, -inf
  %415 = vmax.xlane.f32.xlu0 %v414
  %v416 = vpop.xlane.xlu0 %415
  %v417 = vsel %vm413, %v203, -inf
  %418 = vmax.xlane.f32.xlu0 %v417
  %v419 = vpop.xlane.xlu0 %418
  %v420 = vsel %vm413, %v206, -inf
  %421 = vmax.xlane.f32.xlu0 %v420
  %v422 = vpop.xlane.xlu0 %421
  %v423 = vsel %vm413, %v208, -inf
  %424 = vmax.xlane.f32.xlu0 %v423
  %v425 = vpop.xlane.xlu0 %424
  %v426 = vsel %vm413, %v211, -inf
  %427 = vmax.xlane.f32.xlu0 %v426
  %v428 = vpop.xlane.xlu0 %427
  %v429 = vsel %vm413, %v213, -inf
  %430 = vmax.xlane.f32.xlu0 %v429
  %v431 = vpop.xlane.xlu0 %430
  %v432 = vsel %vm413, %v216, -inf
  %433 = vmax.xlane.f32.xlu0 %v432
  %v434 = vpop.xlane.xlu0 %433
  %v435 = vsel %vm413, %v218, -inf
  %436 = vmax.xlane.f32.xlu0 %v435
  %v437 = vpop.xlane.xlu0 %436
  %v438 = vsub.f32 %v201, %v416
  %v439 = vsub.f32 %v203, %v419
  %v440 = vsub.f32 %v206, %v422
  %v441 = vsub.f32 %v208, %v425
  %v442 = vsub.f32 %v211, %v428
  %v443 = vsub.f32 %v213, %v431
  %v444 = vsub.f32 %v216, %v434
  %v445 = vsub.f32 %v218, %v437
  %v446 = vmul.f32 %v438, 1.442695
  %v447 = vpow.pop %v446
  %v448 = vmul.f32 %v439, 1.442695
  %v449 = vpow.pop %v448
  %v450 = vmul.f32 %v440, 1.442695
  %v451 = vpow.pop %v450
  %v452 = vmul.f32 %v441, 1.442695
  %v453 = vpow.pop %v452
  %v454 = vmul.f32 %v442, 1.442695
  %v455 = vpow.pop %v454
  %v456 = vmul.f32 %v443, 1.442695
  %v457 = vpow.pop %v456
  %v458 = vmul.f32 %v444, 1.442695
  %v459 = vpow.pop %v458
  %v460 = vmul.f32 %v445, 1.442695
  %v461 = vpow.pop %v460
  %470 = vrot.lane.b32.xlu0 %v447, 125
  %v471 = vpop.permute.xlu0 %470
  %472 = vrot.lane.b32.xlu0 %v449, 125
  %v473 = vpop.permute.xlu0 %472
  %474 = vrot.lane.b32.xlu0 %v451, 125
  %v475 = vpop.permute.xlu0 %474
  %476 = vrot.lane.b32.xlu0 %v453, 125
  %v477 = vpop.permute.xlu0 %476
  %478 = vrot.lane.b32.xlu0 %v455, 125
  %v479 = vpop.permute.xlu0 %478
  %480 = vrot.lane.b32.xlu0 %v457, 125
  %v481 = vpop.permute.xlu0 %480
  %482 = vrot.lane.b32.xlu0 %v459, 125
  %v483 = vpop.permute.xlu0 %482
  %484 = vrot.lane.b32.xlu0 %v461, 125
  %v485 = vpop.permute.xlu0 %484
  %v494 = vsel %vm220, %v471, 0.0
  %495 = vadd.xlane.f32.xlu0 %v494
  %v496 = vpop.xlane.xlu0 %495
  %v497 = vsel %vm220, %v473, 0.0
  %498 = vadd.xlane.f32.xlu0 %v497
  %v499 = vpop.xlane.xlu0 %498
  %v500 = vsel %vm220, %v475, 0.0
  %501 = vadd.xlane.f32.xlu0 %v500
  %v502 = vpop.xlane.xlu0 %501
  %v503 = vsel %vm220, %v477, 0.0
  %504 = vadd.xlane.f32.xlu0 %v503
  %v505 = vpop.xlane.xlu0 %504
  %v506 = vsel %vm220, %v479, 0.0
  %507 = vadd.xlane.f32.xlu0 %v506
  %v508 = vpop.xlane.xlu0 %507
  %v509 = vsel %vm220, %v481, 0.0
  %510 = vadd.xlane.f32.xlu0 %v509
  %v511 = vpop.xlane.xlu0 %510
  %v512 = vsel %vm220, %v483, 0.0
  %513 = vadd.xlane.f32.xlu0 %v512
  %v514 = vpop.xlane.xlu0 %513
  %v515 = vsel %vm220, %v485, 0.0
  %516 = vadd.xlane.f32.xlu0 %v515
  %v517 = vpop.xlane.xlu0 %516
  %v518 = vrcp.pop %v496
  %v519 = vmul.f32 %v496, %v518
  %v520 = vsub.f32 1.0, %v519
  %v521 = vmul.f32 %v518, %v520
  %v522 = vadd.f32 %v518, %v521
  %vm523 = vweird.f32 %v496
  %vm524 = vweird.f32 %v518
  %vm525 = vmor %vm523, %vm524
  %v526 = vsel %vm525, %v518, %v522
  %v527 = vand.u32 2147483647, %v496
  %vm528 = vcmp.eq.f32.partialorder %v527, 8.507059e+37
  %v529 = vand.u32 %v496, 2147483648
  %v530 = vor.u32 1.1754944e-38, %v529
  %v531 = vsel %vm528, %v530, %v526
  %v532 = vmul.f32 %v447, %v531
  %v533 = vrcp.pop %v499
  %v534 = vmul.f32 %v499, %v533
  %v535 = vsub.f32 1.0, %v534
  %v536 = vmul.f32 %v533, %v535
  %v537 = vadd.f32 %v533, %v536
  %vm538 = vweird.f32 %v499
  %vm539 = vweird.f32 %v533
  %vm540 = vmor %vm538, %vm539
  %v541 = vsel %vm540, %v533, %v537
  %v542 = vand.u32 2147483647, %v499
  %vm543 = vcmp.eq.f32.partialorder %v542, 8.507059e+37
  %v544 = vand.u32 %v499, 2147483648
  %v545 = vor.u32 1.1754944e-38, %v544
  %v546 = vsel %vm543, %v545, %v541
  %v547 = vmul.f32 %v449, %v546
  %v548 = vrcp.pop %v502
  %v549 = vmul.f32 %v502, %v548
  %v550 = vsub.f32 1.0, %v549
  %v551 = vmul.f32 %v548, %v550
  %v552 = vadd.f32 %v548, %v551
  %vm553 = vweird.f32 %v502
  %vm554 = vweird.f32 %v548
  %vm555 = vmor %vm553, %vm554
  %v556 = vsel %vm555, %v548, %v552
  %v557 = vand.u32 2147483647, %v502
  %vm558 = vcmp.eq.f32.partialorder %v557, 8.507059e+37
  %v559 = vand.u32 %v502, 2147483648
  %v560 = vor.u32 1.1754944e-38, %v559
  %v561 = vsel %vm558, %v560, %v556
  %v562 = vmul.f32 %v451, %v561
  %v563 = vrcp.pop %v505
  %v564 = vmul.f32 %v505, %v563
  %v565 = vsub.f32 1.0, %v564
  %v566 = vmul.f32 %v563, %v565
  %v567 = vadd.f32 %v563, %v566
  %vm568 = vweird.f32 %v505
  %vm569 = vweird.f32 %v563
  %vm570 = vmor %vm568, %vm569
  %v571 = vsel %vm570, %v563, %v567
  %v572 = vand.u32 2147483647, %v505
  %vm573 = vcmp.eq.f32.partialorder %v572, 8.507059e+37
  %v574 = vand.u32 %v505, 2147483648
  %v575 = vor.u32 1.1754944e-38, %v574
  %v576 = vsel %vm573, %v575, %v571
  %v577 = vmul.f32 %v453, %v576
  %v578 = vrcp.pop %v508
  %v579 = vmul.f32 %v508, %v578
  %v580 = vsub.f32 1.0, %v579
  %v581 = vmul.f32 %v578, %v580
  %v582 = vadd.f32 %v578, %v581
  %vm583 = vweird.f32 %v508
  %vm584 = vweird.f32 %v578
  %vm585 = vmor %vm583, %vm584
  %v586 = vsel %vm585, %v578, %v582
  %v587 = vand.u32 2147483647, %v508
  %vm588 = vcmp.eq.f32.partialorder %v587, 8.507059e+37
  %v589 = vand.u32 %v508, 2147483648
  %v590 = vor.u32 1.1754944e-38, %v589
  %v591 = vsel %vm588, %v590, %v586
  %v592 = vmul.f32 %v455, %v591
  %v593 = vrcp.pop %v511
  %v594 = vmul.f32 %v511, %v593
  %v595 = vsub.f32 1.0, %v594
  %v596 = vmul.f32 %v593, %v595
  %v597 = vadd.f32 %v593, %v596
  %vm598 = vweird.f32 %v511
  %vm599 = vweird.f32 %v593
  %vm600 = vmor %vm598, %vm599
  %v601 = vsel %vm600, %v593, %v597
  %v602 = vand.u32 2147483647, %v511
  %vm603 = vcmp.eq.f32.partialorder %v602, 8.507059e+37
  %v604 = vand.u32 %v511, 2147483648
  %v605 = vor.u32 1.1754944e-38, %v604
  %v606 = vsel %vm603, %v605, %v601
  %v607 = vmul.f32 %v457, %v606
  %v608 = vrcp.pop %v514
  %v609 = vmul.f32 %v514, %v608
  %v610 = vsub.f32 1.0, %v609
  %v611 = vmul.f32 %v608, %v610
  %v612 = vadd.f32 %v608, %v611
  %vm613 = vweird.f32 %v514
  %vm614 = vweird.f32 %v608
  %vm615 = vmor %vm613, %vm614
  %v616 = vsel %vm615, %v608, %v612
  %v617 = vand.u32 2147483647, %v514
  %vm618 = vcmp.eq.f32.partialorder %v617, 8.507059e+37
  %v619 = vand.u32 %v514, 2147483648
  %v620 = vor.u32 1.1754944e-38, %v619
  %v621 = vsel %vm618, %v620, %v616
  %v622 = vmul.f32 %v459, %v621
  %v623 = vrcp.pop %v517
  %v624 = vmul.f32 %v517, %v623
  %v625 = vsub.f32 1.0, %v624
  %v626 = vmul.f32 %v623, %v625
  %v627 = vadd.f32 %v623, %v626
  %vm628 = vweird.f32 %v517
  %vm629 = vweird.f32 %v623
  %vm630 = vmor %vm628, %vm629
  %v631 = vsel %vm630, %v623, %v627
  %v632 = vand.u32 2147483647, %v517
  %vm633 = vcmp.eq.f32.partialorder %v632, 8.507059e+37
  %v634 = vand.u32 %v517, 2147483648
  %v635 = vor.u32 1.1754944e-38, %v634
  %v636 = vsel %vm633, %v635, %v631
  %v637 = vmul.f32 %v461, %v636
  %v638 = vsel %vm220, %v307, -inf
  %639 = vmax.xlane.f32.xlu0 %v638
  %v640 = vpop.xlane.xlu0 %639
  %v641 = vsel %vm220, %v322, -inf
  %642 = vmax.xlane.f32.xlu0 %v641
  %v643 = vpop.xlane.xlu0 %642
  %v644 = vsel %vm220, %v337, -inf
  %645 = vmax.xlane.f32.xlu0 %v644
  %v646 = vpop.xlane.xlu0 %645
  %v647 = vsel %vm220, %v352, -inf
  %648 = vmax.xlane.f32.xlu0 %v647
  %v649 = vpop.xlane.xlu0 %648
  %v650 = vsel %vm220, %v367, -inf
  %651 = vmax.xlane.f32.xlu0 %v650
  %v652 = vpop.xlane.xlu0 %651
  %v653 = vsel %vm220, %v382, -inf
  %654 = vmax.xlane.f32.xlu0 %v653
  %v655 = vpop.xlane.xlu0 %654
  %v656 = vsel %vm220, %v397, -inf
  %657 = vmax.xlane.f32.xlu0 %v656
  %v658 = vpop.xlane.xlu0 %657
  %v659 = vsel %vm220, %v412, -inf
  %660 = vmax.xlane.f32.xlu0 %v659
  %v661 = vpop.xlane.xlu0 %660
  %v662 = vsel %vm413, %v532, -inf
  %663 = vmax.xlane.f32.xlu0 %v662
  %v664 = vpop.xlane.xlu0 %663
  %v665 = vsel %vm413, %v547, -inf
  %666 = vmax.xlane.f32.xlu0 %v665
  %v667 = vpop.xlane.xlu0 %666
  %v668 = vsel %vm413, %v562, -inf
  %669 = vmax.xlane.f32.xlu0 %v668
  %v670 = vpop.xlane.xlu0 %669
  %v671 = vsel %vm413, %v577, -inf
  %672 = vmax.xlane.f32.xlu0 %v671
  %v673 = vpop.xlane.xlu0 %672
  %v674 = vsel %vm413, %v592, -inf
  %675 = vmax.xlane.f32.xlu0 %v674
  %v676 = vpop.xlane.xlu0 %675
  %v677 = vsel %vm413, %v607, -inf
  %678 = vmax.xlane.f32.xlu0 %v677
  %v679 = vpop.xlane.xlu0 %678
  %v680 = vsel %vm413, %v622, -inf
  %681 = vmax.xlane.f32.xlu0 %v680
  %v682 = vpop.xlane.xlu0 %681
  %v683 = vsel %vm413, %v637, -inf
  %684 = vmax.xlane.f32.xlu0 %v683
  %v685 = vpop.xlane.xlu0 %684
  %vm686 = vcmp.gt.f32.partialorder %v664, %v640
  %vm687 = vcmp.gt.f32.partialorder %v667, %v643
  %vm688 = vcmp.gt.f32.partialorder %v670, %v646
  %vm689 = vcmp.gt.f32.partialorder %v673, %v649
  %vm690 = vcmp.gt.f32.partialorder %v676, %v652
  %vm691 = vcmp.gt.f32.partialorder %v679, %v655
  %vm692 = vcmp.gt.f32.partialorder %v682, %v658
  %vm693 = vcmp.gt.f32.partialorder %v685, %v661
  %v694 = vsel %vm686, 1, 0
  %v695 = vsel %vm687, 1, 0
  %v696 = vsel %vm688, 1, 0
  %v697 = vsel %vm689, 1, 0
  %v698 = vsel %vm690, 1, 0
  %v699 = vsel %vm691, 1, 0
  %v700 = vsel %vm692, 1, 0
  %v701 = vsel %vm693, 1, 0
  %v702 = vcvt.s32.f32 %v694
  %v703 = vcvt.s32.f32 %v695
  %v704 = vcvt.s32.f32 %v696
  %v705 = vcvt.s32.f32 %v697
  %v706 = vcvt.s32.f32 %v698
  %v707 = vcvt.s32.f32 %v699
  %v708 = vcvt.s32.f32 %v700
  %v709 = vcvt.s32.f32 %v701
  %vm710 = vcmp.eq.s32.totalorder %v694, 1
  %vm711 = vcmp.eq.s32.totalorder %v695, 1
  %vm712 = vcmp.eq.s32.totalorder %v696, 1
  %vm713 = vcmp.eq.s32.totalorder %v697, 1
  %vm714 = vcmp.eq.s32.totalorder %v698, 1
  %vm715 = vcmp.eq.s32.totalorder %v699, 1
  %vm716 = vcmp.eq.s32.totalorder %v700, 1
  %vm717 = vcmp.eq.s32.totalorder %v701, 1
  %726 = vrot.lane.b32.xlu0 %v307, 3
  %v727 = vpop.permute.xlu0 %726
  %728 = vrot.lane.b32.xlu0 %v322, 3
  %v729 = vpop.permute.xlu0 %728
  %730 = vrot.lane.b32.xlu0 %v337, 3
  %v731 = vpop.permute.xlu0 %730
  %732 = vrot.lane.b32.xlu0 %v352, 3
  %v733 = vpop.permute.xlu0 %732
  %734 = vrot.lane.b32.xlu0 %v367, 3
  %v735 = vpop.permute.xlu0 %734
  %736 = vrot.lane.b32.xlu0 %v382, 3
  %v737 = vpop.permute.xlu0 %736
  %738 = vrot.lane.b32.xlu0 %v397, 3
  %v739 = vpop.permute.xlu0 %738
  %740 = vrot.lane.b32.xlu0 %v412, 3
  %v741 = vpop.permute.xlu0 %740
  %v750 = vsel %vm710, %v532, %v727
  %v751 = vsel %vm711, %v547, %v729
  %v752 = vsel %vm712, %v562, %v731
  %v753 = vsel %vm713, %v577, %v733
  %v754 = vsel %vm714, %v592, %v735
  %v755 = vsel %vm715, %v607, %v737
  %v756 = vsel %vm716, %v622, %v739
  %v757 = vsel %vm717, %v637, %v741
  %766 = vrot.lane.b32.xlu0 %v750, 125
  %v767 = vpop.permute.xlu0 %766
  %768 = vrot.lane.b32.xlu0 %v751, 125
  %v769 = vpop.permute.xlu0 %768
  %770 = vrot.lane.b32.xlu0 %v752, 125
  %v771 = vpop.permute.xlu0 %770
  %772 = vrot.lane.b32.xlu0 %v753, 125
  %v773 = vpop.permute.xlu0 %772
  %774 = vrot.lane.b32.xlu0 %v754, 125
  %v775 = vpop.permute.xlu0 %774
  %776 = vrot.lane.b32.xlu0 %v755, 125
  %v777 = vpop.permute.xlu0 %776
  %778 = vrot.lane.b32.xlu0 %v756, 125
  %v779 = vpop.permute.xlu0 %778
  %780 = vrot.lane.b32.xlu0 %v757, 125
  %v781 = vpop.permute.xlu0 %780
  %790 = vrot.lane.b32.xlu0 %v307, 4
  %v791 = vpop.permute.xlu0 %790
  %792 = vrot.lane.b32.xlu0 %v322, 4
  %v793 = vpop.permute.xlu0 %792
  %794 = vrot.lane.b32.xlu0 %v337, 4
  %v795 = vpop.permute.xlu0 %794
  %796 = vrot.lane.b32.xlu0 %v352, 4
  %v797 = vpop.permute.xlu0 %796
  %798 = vrot.lane.b32.xlu0 %v367, 4
  %v799 = vpop.permute.xlu0 %798
  %800 = vrot.lane.b32.xlu0 %v382, 4
  %v801 = vpop.permute.xlu0 %800
  %802 = vrot.lane.b32.xlu0 %v397, 4
  %v803 = vpop.permute.xlu0 %802
  %804 = vrot.lane.b32.xlu0 %v412, 4
  %v805 = vpop.permute.xlu0 %804
  %822 = vrot.lane.b32.xlu0 %v532, 4
  %v823 = vpop.permute.xlu0 %822
  %824 = vrot.lane.b32.xlu0 %v547, 4
  %v825 = vpop.permute.xlu0 %824
  %826 = vrot.lane.b32.xlu0 %v562, 4
  %v827 = vpop.permute.xlu0 %826
  %828 = vrot.lane.b32.xlu0 %v577, 4
  %v829 = vpop.permute.xlu0 %828
  %830 = vrot.lane.b32.xlu0 %v592, 4
  %v831 = vpop.permute.xlu0 %830
  %832 = vrot.lane.b32.xlu0 %v607, 4
  %v833 = vpop.permute.xlu0 %832
  %834 = vrot.lane.b32.xlu0 %v622, 4
  %v835 = vpop.permute.xlu0 %834
  %836 = vrot.lane.b32.xlu0 %v637, 4
  %v837 = vpop.permute.xlu0 %836
  %v846 = vsel %vm220, %v767, %v702
  %v847 = vsel %vm220, %v769, %v703
  %v848 = vsel %vm220, %v771, %v704
  %v849 = vsel %vm220, %v773, %v705
  %v850 = vsel %vm220, %v775, %v706
  %v851 = vsel %vm220, %v777, %v707
  %v852 = vsel %vm220, %v779, %v708
  %v853 = vsel %vm220, %v781, %v709
  %vm854 = vcmask 31744
  %v855 = vsel %vm854, %v846, %v791
  %v856 = vsel %vm854, %v847, %v793
  %v857 = vsel %vm854, %v848, %v795
  %v858 = vsel %vm854, %v849, %v797
  %v859 = vsel %vm854, %v850, %v799
  %v860 = vsel %vm854, %v851, %v801
  %v861 = vsel %vm854, %v852, %v803
  %v862 = vsel %vm854, %v853, %v805
  %vm863 = vcmask 56320
  %v864 = vsel %vm863, %v855, %v823
  %v865 = vsel %vm863, %v856, %v825
  %v866 = vsel %vm863, %v857, %v827
  %v867 = vsel %vm863, %v858, %v829
  %v868 = vsel %vm863, %v859, %v831
  %v869 = vsel %vm863, %v860, %v833
  %v870 = vsel %vm863, %v861, %v835
  %v871 = vsel %vm863, %v862, %v837
  %vm872 = vcmask 80896
  %v873 = vsel %vm872, %v864, 0.0
  %v874 = vsel %vm872, %v865, 0.0
  %v875 = vsel %vm872, %v866, 0.0
  %v876 = vsel %vm872, %v867, 0.0
  %v877 = vsel %vm872, %v868, 0.0
  %v878 = vsel %vm872, %v869, 0.0
  %v879 = vsel %vm872, %v870, 0.0
  %v880 = vsel %vm872, %v871, 0.0
  %vm881 = vcmask 130048
  %882 = vst.msk [vmem:[%s5] sm:$0xff] %vm881, %v873
  %883 = vst.msk [vmem:[%s5 + $0x8] sm:$0xff] %vm881, %v874
  %884 = vst.msk [vmem:[%s5 + $0x10] sm:$0xff] %vm881, %v875
  %885 = vst.msk [vmem:[%s5 + $0x18] sm:$0xff] %vm881, %v876
  %886 = vst.msk [vmem:[%s5 + $0x20] sm:$0xff] %vm881, %v877
  %887 = vst.msk [vmem:[%s5 + $0x28] sm:$0xff] %vm881, %v878
  %888 = vst.msk [vmem:[%s5 + $0x30] sm:$0xff] %vm881, %v879
  %889 = vst.msk [vmem:[%s5 + $0x38] sm:$0xff] %vm881, %v880
  // Predicated region
  $region22: #{tpu_custom_call.1} parent=0 // pred_check
    _
  $region23: #{tpu_custom_call.1} parent=0 // pred_check_branch
    %891 = sbr.rel (0) target = $region25
  $region24: #{tpu_custom_call.1} parent=0 // pred_region
    _
  $region25: #{tpu_custom_call.1} parent=0 // pred_fallthru
    _
  // Predicated region
  $region26: #{tpu_custom_call.1} parent=0 // pred_check
    _
  $region27: #{tpu_custom_call.1} parent=0 // pred_check_branch
    %893 = sbr.rel (0) target = $region29
  $region28: #{tpu_custom_call.1} parent=0 // pred_region
    _
  $region29: #{tpu_custom_call.1} parent=0 // pred_fallthru
    _

</llo_original>
